<compile_context>
chip_gen: v7x
topology: tpu7x:2x2x1
jax: 0.10.0
libtpu: 0.0.40
codegen_flags: <defaults>
</compile_context>

<pallas_src>
import jax
import jax.numpy as jnp
from jax.experimental import pallas as pl
from jax.experimental.pallas import tpu as pltpu

HIDDEN_PAD = 128    # hidden_dim padded to one full lane width
OUT_PAD = 128       # policy logits + value packed & padded to one full lane width
TB_MAX = 2048       # max batch-tile rows (amortizes ~0.35 us/step grid overhead)
SPLIT_MIN_B = 512   # above this batch size, force >=2 tiles so v7x uses both TCs


def _round_up(n, m):
    return ((n + m - 1) // m) * m


def ppo_kernel(x_ref, w1_ref, w2_ref, w3_ref, b_ref, o_ref):
    cdt = w1_ref.dtype                       # bf16 compute dtype (MXU operands + tail)
    # Biases (packed [3, OUT_PAD] f32 slab): row 0 -> b1, row 1 -> b2, row 2 -> heads.
    # Cast the tiny (1,128) rows to bf16 in-kernel so the elementwise tail stays narrow.
    b1 = b_ref[0:1, :].astype(cdt)
    b2 = b_ref[1:2, :].astype(cdt)
    b3 = b_ref[2:3, :].astype(cdt)

    # In-kernel cast of the f32 input tile (only S lanes wide -> essentially free;
    # avoids a separate full-batch XLA cast+copy pass in the wrapper).
    x = x_ref[...].astype(cdt)

    # fc1 + ReLU: MXU accumulates in f32; tail (bias add + ReLU) runs in bf16 with the
    # downcast fused in (halves vreg pressure / VALU work on v6e/v7x).
    h1 = jnp.dot(x, w1_ref[...], preferred_element_type=jnp.float32)
    h1 = jnp.maximum(h1.astype(cdt) + b1, 0)

    # fc2 + ReLU
    h2 = jnp.dot(h1, w2_ref[...], preferred_element_type=jnp.float32)
    h2 = jnp.maximum(h2.astype(cdt) + b2, 0)

    # fused policy + value heads (packed into one lane-dense matmul)
    out = jnp.dot(h2, w3_ref[...], preferred_element_type=jnp.float32)
    o_ref[...] = (out.astype(cdt) + b3).astype(o_ref.dtype)


def _choose_tile(batch):
    """Pick a batch-tile size: big tiles, >=2 (even) tiles for large B, <8 pad rows/tile."""
    n_tiles = pl.cdiv(batch, TB_MAX)
    if batch >= SPLIT_MIN_B:
        n_tiles = max(n_tiles, 2)            # give v7x's two TensorCores work
    if n_tiles > 1 and n_tiles % 2:
        n_tiles += 1                         # even tile count balances the 2 TCs
    return _round_up(pl.cdiv(batch, n_tiles), 8)


def ppo_forward(x, kp, action_dim):
    """x: [B, state_dim] f32. kp: prepared kernel params. Returns (logits, value) bf16."""
    B, S = x.shape
    tb = _choose_tile(B)
    grid = pl.cdiv(B, tb)

    flops = 2 * B * (S * HIDDEN_PAD + HIDDEN_PAD * HIDDEN_PAD + HIDDEN_PAD * OUT_PAD)
    bytes_accessed = (B * S * 4                                # x read (f32)
                      + (S + 2 * HIDDEN_PAD) * HIDDEN_PAD * 2  # resident bf16 weights
                      + 3 * OUT_PAD * 4                        # bias slab
                      + B * OUT_PAD * 2)                       # bf16 output write

    out = pl.pallas_call(
        ppo_kernel,
        out_shape=jax.ShapeDtypeStruct((B, OUT_PAD), jnp.bfloat16),
        grid=(grid,),
        in_specs=[
            pl.BlockSpec((tb, S), lambda i: (i, 0)),                    # x: batch-tiled
            pl.BlockSpec((S, HIDDEN_PAD), lambda i: (0, 0)),            # W1: resident
            pl.BlockSpec((HIDDEN_PAD, HIDDEN_PAD), lambda i: (0, 0)),   # W2: resident
            pl.BlockSpec((HIDDEN_PAD, OUT_PAD), lambda i: (0, 0)),      # packed heads W
            pl.BlockSpec((3, OUT_PAD), lambda i: (0, 0)),               # packed biases
        ],
        out_specs=pl.BlockSpec((tb, OUT_PAD), lambda i: (i, 0)),
        compiler_params=pltpu.CompilerParams(
            dimension_semantics=("parallel",)),   # batch tiles -> both TCs on v7x
        cost_estimate=pl.CostEstimate(
            flops=flops, transcendentals=0, bytes_accessed=bytes_accessed),
    )(x, kp["w1"], kp["w2"], kp["w3"], kp["bias"])

    logits = out[:, :action_dim]
    value = out[:, action_dim:action_dim + 1]
    return logits, value


def init_ppo_params(key, state_dim, action_dim, hidden_dim=32):
    """PyTorch nn.Linear default init: U(+-1/sqrt(fan_in)); W stored as [in, out]."""
    def linear(k, fan_in, fan_out):
        kw, kb = jax.random.split(k)
        bound = 1.0 / jnp.sqrt(jnp.float32(fan_in))
        w = jax.random.uniform(kw, (fan_in, fan_out), jnp.float32, -bound, bound)
        b = jax.random.uniform(kb, (fan_out,), jnp.float32, -bound, bound)
        return w, b

    k1, k2, k3, k4 = jax.random.split(key, 4)
    w1, b1 = linear(k1, state_dim, hidden_dim)
    w2, b2 = linear(k2, hidden_dim, hidden_dim)
    wp, bp = linear(k3, hidden_dim, action_dim)   # policy head
    wv, bv = linear(k4, hidden_dim, 1)            # value head
    return {"w1": w1, "b1": b1, "w2": w2, "b2": b2,
            "wp": wp, "bp": bp, "wv": wv, "bv": bv}


def prepare_kernel_params(p, compute_dtype=jnp.bfloat16):
    """Zero-pad hidden to 128, pack policy+value heads and all biases lane-dense."""
    S, H = p["w1"].shape
    A = p["wp"].shape[1]
    assert H <= HIDDEN_PAD and A + 1 <= OUT_PAD

    w1 = jnp.zeros((S, HIDDEN_PAD), jnp.float32).at[:, :H].set(p["w1"])
    w2 = jnp.zeros((HIDDEN_PAD, HIDDEN_PAD), jnp.float32).at[:H, :H].set(p["w2"])
    w3 = jnp.zeros((HIDDEN_PAD, OUT_PAD), jnp.float32)
    w3 = w3.at[:H, :A].set(p["wp"]).at[:H, A:A + 1].set(p["wv"])

    bias = jnp.zeros((3, OUT_PAD), jnp.float32)
    bias = bias.at[0, :H].set(p["b1"]).at[1, :H].set(p["b2"])
    bias = bias.at[2, :A].set(p["bp"]).at[2, A:A + 1].set(p["bv"])

    return {"w1": w1.astype(compute_dtype),
            "w2": w2.astype(compute_dtype),
            "w3": w3.astype(compute_dtype),
            "bias": bias}  # bias slab stays f32 in HBM; cast per-row in-kernel


def ppo_reference(x, p):
    h = jnp.maximum(x @ p["w1"] + p["b1"], 0.0)
    h = jnp.maximum(h @ p["w2"] + p["b2"], 0.0)
    logits = h @ p["wp"] + p["bp"]
    value = h @ p["wv"] + p["bv"]
    return logits, value


if __name__ == "__main__":
    key = jax.random.PRNGKey(0)
    k_param, k_x = jax.random.split(key)

    batch, state_dim, action_dim, hidden = 8, 8, 4, 32
    params = init_ppo_params(k_param, state_dim, action_dim, hidden)
    kparams = prepare_kernel_params(params)
    x = jax.random.normal(k_x, (batch, state_dim), jnp.float32)

    logits, value = ppo_forward(x, kparams, action_dim)
    logits, value = jax.block_until_ready((logits, value))

    ref_logits, ref_value = ppo_reference(x, params)
    assert logits.shape == (batch, action_dim)
    assert value.shape == (batch, 1)
    # bf16 matmul operands / tail / output with f32 MXU accumulation -> loose tolerance.
    assert jnp.allclose(logits.astype(jnp.float32), ref_logits,
                        atol=5e-2, rtol=5e-2), "policy mismatch"
    assert jnp.allclose(value.astype(jnp.float32), ref_value,
                        atol=5e-2, rtol=5e-2), "value mismatch"

    print("KERNEL_OK")
</pallas_src>

<mosaic_0001>
module attributes {stable_mosaic.version = 11 : i64} {
  func.func @ppo_kernel(%arg0: i32, %arg1: memref<8x8xf32, #tpu.memory_space<vmem>>, %arg2: memref<8x128xbf16, #tpu.memory_space<vmem>>, %arg3: memref<128x128xbf16, #tpu.memory_space<vmem>>, %arg4: memref<128x128xbf16, #tpu.memory_space<vmem>>, %arg5: memref<3x128xf32, #tpu.memory_space<vmem>>, %arg6: memref<8x128xbf16, #tpu.memory_space<vmem>>) attributes {dimension_semantics = [#tpu.dimension_semantics<parallel>], iteration_bounds = array<i64: 1>, scalar_prefetch = 0 : i64, scratch_operands = 0 : i64, tpu.core_type = #tpu.core_type<tc>, window_params = [{transform_indices = @transform_0, window_bounds = array<i64: 8, 8>}, {pipeline_mode = #tpu.pipeline_mode<synchronous>, transform_indices = @transform_1, window_bounds = array<i64: 8, 128>}, {pipeline_mode = #tpu.pipeline_mode<synchronous>, transform_indices = @transform_2, window_bounds = array<i64: 128, 128>}, {pipeline_mode = #tpu.pipeline_mode<synchronous>, transform_indices = @transform_3, window_bounds = array<i64: 128, 128>}, {pipeline_mode = #tpu.pipeline_mode<synchronous>, transform_indices = @transform_4, window_bounds = array<i64: 3, 128>}, {transform_indices = @transform_5, window_bounds = array<i64: 8, 128>}]} {
    %c0 = arith.constant 0 : index
    %c0_0 = arith.constant 0 : index
    %0 = vector.load %arg5[%c0, %c0_0] : memref<3x128xf32, #tpu.memory_space<vmem>>, vector<1x128xf32>
    %1 = arith.truncf %0 : vector<1x128xf32> to vector<1x128xbf16>
    %c1 = arith.constant 1 : index
    %c0_1 = arith.constant 0 : index
    %2 = vector.load %arg5[%c1, %c0_1] : memref<3x128xf32, #tpu.memory_space<vmem>>, vector<1x128xf32>
    %3 = arith.truncf %2 : vector<1x128xf32> to vector<1x128xbf16>
    %c2 = arith.constant 2 : index
    %c0_2 = arith.constant 0 : index
    %4 = vector.load %arg5[%c2, %c0_2] : memref<3x128xf32, #tpu.memory_space<vmem>>, vector<1x128xf32>
    %5 = arith.truncf %4 : vector<1x128xf32> to vector<1x128xbf16>
    %c0_3 = arith.constant 0 : index
    %c0_4 = arith.constant 0 : index
    %6 = vector.load %arg1[%c0_3, %c0_4] : memref<8x8xf32, #tpu.memory_space<vmem>>, vector<8x8xf32>
    %7 = arith.truncf %6 : vector<8x8xf32> to vector<8x8xbf16>
    %c0_5 = arith.constant 0 : index
    %c0_6 = arith.constant 0 : index
    %8 = vector.load %arg2[%c0_5, %c0_6] : memref<8x128xbf16, #tpu.memory_space<vmem>>, vector<8x128xbf16>
    %cst = arith.constant dense<0.000000e+00> : vector<8x128xf32>
    %9 = tpu.matmul %7, %8, %cst {dimension_numbers = #tpu.dot_dimension_numbers<[1], [0], [0], [1], [0, 0, 1, 1], [], []>} : vector<8x8xbf16>, vector<8x128xbf16>, vector<8x128xf32> -> vector<8x128xf32>
    %10 = arith.truncf %9 : vector<8x128xf32> to vector<8x128xbf16>
    %11 = vector.broadcast %1 : vector<1x128xbf16> to vector<8x128xbf16>
    %12 = arith.addf %10, %11 : vector<8x128xbf16>
    %cst_7 = arith.constant 0.000000e+00 : bf16
    %13 = vector.broadcast %cst_7 : bf16 to vector<8x128xbf16>
    %14 = arith.maximumf %12, %13 : vector<8x128xbf16>
    %c0_8 = arith.constant 0 : index
    %c0_9 = arith.constant 0 : index
    %15 = vector.load %arg3[%c0_8, %c0_9] : memref<128x128xbf16, #tpu.memory_space<vmem>>, vector<128x128xbf16>
    %cst_10 = arith.constant dense<0.000000e+00> : vector<8x128xf32>
    %16 = tpu.matmul %14, %15, %cst_10 {dimension_numbers = #tpu.dot_dimension_numbers<[1], [0], [0], [1], [0, 0, 1, 1], [], []>} : vector<8x128xbf16>, vector<128x128xbf16>, vector<8x128xf32> -> vector<8x128xf32>
    %17 = arith.truncf %16 : vector<8x128xf32> to vector<8x128xbf16>
    %18 = vector.broadcast %3 : vector<1x128xbf16> to vector<8x128xbf16>
    %19 = arith.addf %17, %18 : vector<8x128xbf16>
    %cst_11 = arith.constant 0.000000e+00 : bf16
    %20 = vector.broadcast %cst_11 : bf16 to vector<8x128xbf16>
    %21 = arith.maximumf %19, %20 : vector<8x128xbf16>
    %c0_12 = arith.constant 0 : index
    %c0_13 = arith.constant 0 : index
    %22 = vector.load %arg4[%c0_12, %c0_13] : memref<128x128xbf16, #tpu.memory_space<vmem>>, vector<128x128xbf16>
    %cst_14 = arith.constant dense<0.000000e+00> : vector<8x128xf32>
    %23 = tpu.matmul %21, %22, %cst_14 {dimension_numbers = #tpu.dot_dimension_numbers<[1], [0], [0], [1], [0, 0, 1, 1], [], []>} : vector<8x128xbf16>, vector<128x128xbf16>, vector<8x128xf32> -> vector<8x128xf32>
    %24 = arith.truncf %23 : vector<8x128xf32> to vector<8x128xbf16>
    %25 = vector.broadcast %5 : vector<1x128xbf16> to vector<8x128xbf16>
    %26 = arith.addf %24, %25 : vector<8x128xbf16>
    %c0_15 = arith.constant 0 : index
    %c0_16 = arith.constant 0 : index
    %27 = vector.load %arg6[%c0_15, %c0_16] : memref<8x128xbf16, #tpu.memory_space<vmem>>, vector<8x128xbf16>
    tpu.vector_store %arg6[%c0_15, %c0_16], %26 {strides = array<i32>} : memref<8x128xbf16, #tpu.memory_space<vmem>>, vector<8x128xbf16>,
    return
  }
  func.func @transform_0(%arg0: i32) -> (i32, i32) {
    %c0_i32 = arith.constant 0 : i32
    %c0_i32_0 = arith.constant 0 : i32
    return %arg0, %c0_i32 : i32, i32
  }
  func.func @transform_1(%arg0: i32) -> (i32, i32) {
    %c0_i32 = arith.constant 0 : i32
    %c0_i32_0 = arith.constant 0 : i32
    %c0_i32_1 = arith.constant 0 : i32
    return %c0_i32, %c0_i32_0 : i32, i32
  }
  func.func @transform_2(%arg0: i32) -> (i32, i32) {
    %c0_i32 = arith.constant 0 : i32
    %c0_i32_0 = arith.constant 0 : i32
    %c0_i32_1 = arith.constant 0 : i32
    return %c0_i32, %c0_i32_0 : i32, i32
  }
  func.func @transform_3(%arg0: i32) -> (i32, i32) {
    %c0_i32 = arith.constant 0 : i32
    %c0_i32_0 = arith.constant 0 : i32
    %c0_i32_1 = arith.constant 0 : i32
    return %c0_i32, %c0_i32_0 : i32, i32
  }
  func.func @transform_4(%arg0: i32) -> (i32, i32) {
    %c0_i32 = arith.constant 0 : i32
    %c0_i32_0 = arith.constant 0 : i32
    %c0_i32_1 = arith.constant 0 : i32
    return %c0_i32, %c0_i32_0 : i32, i32
  }
  func.func @transform_5(%arg0: i32) -> (i32, i32) {
    %c0_i32 = arith.constant 0 : i32
    %c0_i32_0 = arith.constant 0 : i32
    return %arg0, %c0_i32 : i32, i32
  }
}

</mosaic_0001>

<llo_original>
// kernel: tpu_custom_call.1
$region0: #{tpu_custom_call.1}
  #allocation0 [shape = 'u32[]', space=smem, size = 0x4, offset = 0x4, fixed_abs, tag = 'smem constant byte address 0x4 - core index']
  #allocation1 [shape = 'u32[144,128]{1,0:T(1,128)}', space=vmem, size = 0x12000, scoped, tag = 'internal scratch']
  %s0 = inlined_call_operand.hbm [shape: f32[8,8], index: 0, kind: input, shape index: {}]
  %s1 = inlined_call_operand.hbm [shape: bf16[8,128], index: 1, kind: input, shape index: {}]
  %s2 = inlined_call_operand.hbm [shape: bf16[128,128], index: 2, kind: input, shape index: {}]
  %s3 = inlined_call_operand.hbm [shape: bf16[128,128], index: 3, kind: input, shape index: {}]
  %s4 = inlined_call_operand.vmem [shape: f32[3,128], index: 4, kind: input, shape index: {}]
  %s5 = inlined_call_operand.hbm [shape: bf16[8,128], index: 5, kind: output, shape index: {}]
  %s6 = sld [smem:[#allocation0]]
  $region46: #{tpu_custom_call.1} parent=0
    _
  %s8 = ssub.s32 1, %s6
  %s9 = scalar_select 0, %s8, %s6
  $region1: #{tpu_custom_call.1} parent=0
    #allocation2 [shape = 'u8[4096]{0}', space=vmem, size = 0x1000, scoped, tag = 'input window, operand 0, single buffered']
    #allocation3 [shape = 's32[1]{0}', space=sflag, size = 0x4, scoped, tag = 'scoped memory for tpu_custom_call.1']
    #allocation4 [shape = 's32[1]{0}', space=sflag, size = 0x4, scoped, tag = 'scoped memory for tpu_custom_call.1']
    #allocation5 [shape = 'u8[2048]{0}', space=vmem, size = 0x800, scoped, tag = 'input window, operand 1, single buffered']
    #allocation6 [shape = 's32[1]{0}', space=sflag, size = 0x4, scoped, tag = 'scoped memory for tpu_custom_call.1']
    #allocation7 [shape = 'u8[32768]{0}', space=vmem, size = 0x8000, scoped, tag = 'input window, operand 2, single buffered']
    #allocation8 [shape = 'u8[32768]{0}', space=vmem, size = 0x8000, scoped, tag = 'input window, operand 3, single buffered']
    #allocation9 [shape = 's32[1]{0}', space=sflag, size = 0x4, scoped, tag = 'scoped memory for tpu_custom_call.1']
    #allocation10 [shape = 'u8[2048]{0}', space=vmem, size = 0x800, scoped, tag = 'output window, operand 0, single buffered']
    %10 = vsyncpa [#allocation3], 0
    %11 = vsyncpa [#allocation6], 0
    %12 = vsyncpa [#allocation9], 0
    %13 = vsyncpa [#allocation4], 0
    // Predicated region
    $region2: #{tpu_custom_call.1} parent=1 // pred_check
      _
    $region3: #{tpu_custom_call.1} parent=1 // pred_check_branch
      %15 = sbr.rel (0) target = $region5
    $region4: #{tpu_custom_call.1} parent=1 // pred_region
      %s17 = ssub.s32 128, 128
      %18 = vsyncadd [#allocation3], %s17
      %s20 = sshll.u32 [#allocation2], 4
      %s21 = int_to_ptr.vmem [resolvable:$true] %s20
      %23 = dma.hbm_to_vmem [thread:$0]  %s0, 128, %s21, [#allocation3]
    $region5: #{tpu_custom_call.1} parent=1 // pred_fallthru
      _
    // Predicated region
    $region6: #{tpu_custom_call.1} parent=1 // pred_check
      _
    $region7: #{tpu_custom_call.1} parent=1 // pred_check_branch
      %25 = sbr.rel (0) target = $region9
    $region8: #{tpu_custom_call.1} parent=1 // pred_region
      %s27 = ssub.s32 64, 64
      %28 = vsyncadd [#allocation6], %s27
      %s30 = sshll.u32 [#allocation5], 4
      %s31 = int_to_ptr.vmem [resolvable:$true] %s30
      %33 = dma.hbm_to_vmem [thread:$0]  %s1, 64, %s31, [#allocation6]
    $region9: #{tpu_custom_call.1} parent=1 // pred_fallthru
      _
    // Predicated region
    $region10: #{tpu_custom_call.1} parent=1 // pred_check
      _
    $region11: #{tpu_custom_call.1} parent=1 // pred_check_branch
      %35 = sbr.rel (0) target = $region13
    $region12: #{tpu_custom_call.1} parent=1 // pred_region
      %s37 = ssub.s32 1024, 1024
      %38 = vsyncadd [#allocation6], %s37
      %s39 = sshll.u32 [#allocation7], 4
      %s40 = int_to_ptr.vmem [resolvable:$true] %s39
      %45 = dma.hbm_to_vmem [thread:$0]  %s2, 1024, %s40, [#allocation6], 64, 64, 4
    $region13: #{tpu_custom_call.1} parent=1 // pred_fallthru
      _
    // Predicated region
    $region14: #{tpu_custom_call.1} parent=1 // pred_check
      _
    $region15: #{tpu_custom_call.1} parent=1 // pred_check_branch
      %47 = sbr.rel (0) target = $region17
    $region16: #{tpu_custom_call.1} parent=1 // pred_region
      %s49 = ssub.s32 1024, 1024
      %50 = vsyncadd [#allocation9], %s49
      %s51 = sshll.u32 [#allocation8], 4
      %s52 = int_to_ptr.vmem [resolvable:$true] %s51
      %57 = dma.hbm_to_vmem [thread:$0]  %s3, 1024, %s52, [#allocation9], 64, 64, 4
    $region17: #{tpu_custom_call.1} parent=1 // pred_fallthru
      _
    // Predicated region
    $region18: #{tpu_custom_call.1} parent=1 // pred_check
      _
    $region19: #{tpu_custom_call.1} parent=1 // pred_check_branch
      %59 = sbr.rel (0) target = $region21
    $region20: #{tpu_custom_call.1} parent=1 // pred_region
      _
    $region21: #{tpu_custom_call.1} parent=1 // pred_fallthru
      _
    // Predicated region
    $region22: #{tpu_custom_call.1} parent=1 // pred_check
      _
    $region23: #{tpu_custom_call.1} parent=1 // pred_check_branch
      %61 = sbr.rel (0) target = $region25
    $region24: #{tpu_custom_call.1} parent=1 // pred_region
      %62 = dma.done [#allocation3], 128
    $region25: #{tpu_custom_call.1} parent=1 // pred_fallthru
      _
    // Predicated region
    $region26: #{tpu_custom_call.1} parent=1 // pred_check
      _
    $region27: #{tpu_custom_call.1} parent=1 // pred_check_branch
      %64 = sbr.rel (0) target = $region29
    $region28: #{tpu_custom_call.1} parent=1 // pred_region
      %65 = dma.done [#allocation6], 64
    $region29: #{tpu_custom_call.1} parent=1 // pred_fallthru
      _
    // Predicated region
    $region30: #{tpu_custom_call.1} parent=1 // pred_check
      _
    $region31: #{tpu_custom_call.1} parent=1 // pred_check_branch
      %67 = sbr.rel (0) target = $region33
    $region32: #{tpu_custom_call.1} parent=1 // pred_region
      %68 = dma.done [#allocation6], 1024
    $region33: #{tpu_custom_call.1} parent=1 // pred_fallthru
      _
    // Predicated region
    $region34: #{tpu_custom_call.1} parent=1 // pred_check
      _
    $region35: #{tpu_custom_call.1} parent=1 // pred_check_branch
      %70 = sbr.rel (0) target = $region37
    $region36: #{tpu_custom_call.1} parent=1 // pred_region
      %71 = dma.done [#allocation9], 1024
    $region37: #{tpu_custom_call.1} parent=1 // pred_fallthru
      _
    %v73 = vld [vmem:[%s4] sm:$0x1]
    %v74 = vpack.c.bf16 %v73, %v73
    %v75 = vld [vmem:[%s4 + $0x1] sm:$0x1]
    %v76 = vpack.c.bf16 %v75, %v75
    %v77 = vld [vmem:[%s4 + $0x2] sm:$0x1]
    %v78 = vpack.c.bf16 %v77, %v77
    %v79 = vld [vmem:[#allocation2] sm:$0xff]
    %v80 = vpack.c.bf16 %v79, %v79
    %v81 = vld [vmem:[#allocation5] sm:$0xf]
    %vm82 = vcmask 64512
    %v84 = vsel %vm82, %v80, 0
    %vm86 = vcmask 1043456
    %v88 = vsel %vm86, %v81, 0
    %90 = vmatprep.subr.bf16.mxu0 0
    %91 = vmatpush1.bf16.msra.mxu0 %v88
    %92 = vmatprep.subr.bf16.mxu0 0
    %93 = vmatpush1.bf16.msra.mxu0 0
    %94 = vmatprep.subr.bf16.mxu0 0
    %95 = vmatpush1.bf16.msra.mxu0 0
    %96 = vmatprep.subr.bf16.mxu0 0
    %97 = vmatpush1.bf16.msra.mxu0 0
    %98 = vmatprep.subr.bf16.mxu0 0
    %99 = vmatpush1.bf16.msra.mxu0 0
    %100 = vmatprep.subr.bf16.mxu0 0
    %101 = vmatpush1.bf16.msra.mxu0 0
    %102 = vmatprep.subr.bf16.mxu0 0
    %103 = vmatpush1.bf16.msra.mxu0 0
    %104 = vmatprep.subr.bf16.mxu0 0
    %105 = vmatpush1.bf16.msra.mxu0 0
    %106 = vmatprep.subr.bf16.mxu0 0
    %107 = vmatpush1.bf16.msra.mxu0 0
    %108 = vmatprep.subr.bf16.mxu0 0
    %109 = vmatpush1.bf16.msra.mxu0 0
    %110 = vmatprep.subr.bf16.mxu0 0
    %111 = vmatpush1.bf16.msra.mxu0 0
    %112 = vmatprep.subr.bf16.mxu0 0
    %113 = vmatpush1.bf16.msra.mxu0 0
    %114 = vmatprep.subr.bf16.mxu0 0
    %115 = vmatpush1.bf16.msra.mxu0 0
    %116 = vmatprep.subr.bf16.mxu0 0
    %117 = vmatpush1.bf16.msra.mxu0 0
    %118 = vmatprep.subr.bf16.mxu0 0
    %119 = vmatpush1.bf16.msra.mxu0 0
    %120 = vmatprep.subr.bf16.mxu0 0
    %121 = vmatpush1.bf16.msra.mxu0 0
    %122 = vmatprep.mubr.bf16.mxu0 0
    %123 = vmatmul.mubr.bf16.gmra.mrb[0].mxu0 %v84
    %v124 = vpop.f32.mrb[0].mxu0
    %v125 = vadd.f32 0.0, %v124
    %v126 = vpop.f32.mrb[0].mxu0
    %v127 = vpop.f32.mrb[0].mxu0
    %v128 = vpop.f32.mrb[0].mxu0
    %129 = vdwg.mxu0
    %v130 = vpack.c.bf16 %v125, %v125
    %v132 = vpack.i.b16 %v74, %v74
    %v134 = vlaneseq
    %v135 = vshrl.u32 %v134, 7
    %v136 = vsub.s32 0, %v135
    %v137 = vrot.slane %v132, %v136
    %v138 = vadd.bf16 %v130, %v137
    %v139 = vmax.bf16 %v138, 0
    %v140 = vld [vmem:[#allocation7] sm:$0xf]
    %v141 = vld [vmem:[#allocation7 + $0x4] sm:$0xf]
    %v142 = vld [vmem:[#allocation7 + $0x8] sm:$0xf]
    %v143 = vld [vmem:[#allocation7 + $0xc] sm:$0xf]
    %v144 = vld [vmem:[#allocation7 + $0x10] sm:$0xf]
    %v145 = vld [vmem:[#allocation7 + $0x14] sm:$0xf]
    %v146 = vld [vmem:[#allocation7 + $0x18] sm:$0xf]
    %v147 = vld [vmem:[#allocation7 + $0x1c] sm:$0xf]
    %v148 = vld [vmem:[#allocation7 + $0x20] sm:$0xf]
    %v149 = vld [vmem:[#allocation7 + $0x24] sm:$0xf]
    %v150 = vld [vmem:[#allocation7 + $0x28] sm:$0xf]
    %v151 = vld [vmem:[#allocation7 + $0x2c] sm:$0xf]
    %v152 = vld [vmem:[#allocation7 + $0x30] sm:$0xf]
    %v153 = vld [vmem:[#allocation7 + $0x34] sm:$0xf]
    %v154 = vld [vmem:[#allocation7 + $0x38] sm:$0xf]
    %v155 = vld [vmem:[#allocation7 + $0x3c] sm:$0xf]
    %v172 = vunpack.c.l.b16 %v140
    %v173 = vunpack.c.l.b16 %v141
    %v174 = vunpack.c.l.b16 %v142
    %v175 = vunpack.c.l.b16 %v143
    %v176 = vunpack.c.l.b16 %v144
    %v177 = vunpack.c.l.b16 %v145
    %v178 = vunpack.c.l.b16 %v146
    %v179 = vunpack.c.l.b16 %v147
    %v180 = vunpack.c.l.b16 %v148
    %v181 = vunpack.c.l.b16 %v149
    %v182 = vunpack.c.l.b16 %v150
    %v183 = vunpack.c.l.b16 %v151
    %v184 = vunpack.c.l.b16 %v152
    %v185 = vunpack.c.l.b16 %v153
    %v186 = vunpack.c.l.b16 %v154
    %v187 = vunpack.c.l.b16 %v155
    %v188 = vpack.c.b16 %v173, %v172
    %v189 = vpack.c.b16 %v175, %v174
    %v190 = vpack.c.b16 %v177, %v176
    %v191 = vpack.c.b16 %v179, %v178
    %v192 = vpack.c.b16 %v181, %v180
    %v193 = vpack.c.b16 %v183, %v182
    %v194 = vpack.c.b16 %v185, %v184
    %v195 = vpack.c.b16 %v187, %v186
    %204 = vmatprep.subr.bf16.mxu0 0
    %205 = vmatpush1.bf16.msra.mxu0 %v188
    %206 = vmatprep.subr.bf16.mxu0 0
    %207 = vmatpush1.bf16.msra.mxu0 %v189
    %208 = vmatprep.subr.bf16.mxu0 0
    %209 = vmatpush1.bf16.msra.mxu0 %v190
    %210 = vmatprep.subr.bf16.mxu0 0
    %211 = vmatpush1.bf16.msra.mxu0 %v191
    %212 = vmatprep.subr.bf16.mxu0 0
    %213 = vmatpush1.bf16.msra.mxu0 %v192
    %214 = vmatprep.subr.bf16.mxu0 0
    %215 = vmatpush1.bf16.msra.mxu0 %v193
    %216 = vmatprep.subr.bf16.mxu0 0
    %217 = vmatpush1.bf16.msra.mxu0 %v194
    %218 = vmatprep.subr.bf16.mxu0 0
    %219 = vmatpush1.bf16.msra.mxu0 %v195
    %220 = vmatprep.subr.bf16.mxu0 0
    %221 = vmatpush1.bf16.msra.mxu0 0
    %222 = vmatprep.subr.bf16.mxu0 0
    %223 = vmatpush1.bf16.msra.mxu0 0
    %224 = vmatprep.subr.bf16.mxu0 0
    %225 = vmatpush1.bf16.msra.mxu0 0
    %226 = vmatprep.subr.bf16.mxu0 0
    %227 = vmatpush1.bf16.msra.mxu0 0
    %228 = vmatprep.subr.bf16.mxu0 0
    %229 = vmatpush1.bf16.msra.mxu0 0
    %230 = vmatprep.subr.bf16.mxu0 0
    %231 = vmatpush1.bf16.msra.mxu0 0
    %232 = vmatprep.subr.bf16.mxu0 0
    %233 = vmatpush1.bf16.msra.mxu0 0
    %234 = vmatprep.subr.bf16.mxu0 0
    %235 = vmatpush1.bf16.msra.mxu0 0
    %236 = vmatprep.mubr.bf16.mxu0 0
    %237 = vmatmul.mubr.bf16.gmra.mrb[0].mxu0 %v139
    %v238 = vpop.f32.mrb[0].mxu0
    %v239 = vadd.f32 0.0, %v238
    %v240 = vpop.f32.mrb[0].mxu0
    %v241 = vpop.f32.mrb[0].mxu0
    %v242 = vpop.f32.mrb[0].mxu0
    %243 = vdwg.mxu0
    %v244 = vpack.c.bf16 %v239, %v239
    %v246 = vpack.i.b16 %v76, %v76
    %v248 = vlaneseq
    %v249 = vshrl.u32 %v248, 7
    %v250 = vsub.s32 0, %v249
    %v251 = vrot.slane %v246, %v250
    %v252 = vadd.bf16 %v244, %v251
    %v253 = vmax.bf16 %v252, 0
    %v254 = vld [vmem:[#allocation8] sm:$0xf]
    %v255 = vld [vmem:[#allocation8 + $0x4] sm:$0xf]
    %v256 = vld [vmem:[#allocation8 + $0x8] sm:$0xf]
    %v257 = vld [vmem:[#allocation8 + $0xc] sm:$0xf]
    %v258 = vld [vmem:[#allocation8 + $0x10] sm:$0xf]
    %v259 = vld [vmem:[#allocation8 + $0x14] sm:$0xf]
    %v260 = vld [vmem:[#allocation8 + $0x18] sm:$0xf]
    %v261 = vld [vmem:[#allocation8 + $0x1c] sm:$0xf]
    %v262 = vld [vmem:[#allocation8 + $0x20] sm:$0xf]
    %v263 = vld [vmem:[#allocation8 + $0x24] sm:$0xf]
    %v264 = vld [vmem:[#allocation8 + $0x28] sm:$0xf]
    %v265 = vld [vmem:[#allocation8 + $0x2c] sm:$0xf]
    %v266 = vld [vmem:[#allocation8 + $0x30] sm:$0xf]
    %v267 = vld [vmem:[#allocation8 + $0x34] sm:$0xf]
    %v268 = vld [vmem:[#allocation8 + $0x38] sm:$0xf]
    %v269 = vld [vmem:[#allocation8 + $0x3c] sm:$0xf]
    %v286 = vunpack.c.l.b16 %v254
    %v287 = vunpack.c.l.b16 %v255
    %v288 = vunpack.c.l.b16 %v256
    %v289 = vunpack.c.l.b16 %v257
    %v290 = vunpack.c.l.b16 %v258
    %v291 = vunpack.c.l.b16 %v259
    %v292 = vunpack.c.l.b16 %v260
    %v293 = vunpack.c.l.b16 %v261
    %v294 = vunpack.c.l.b16 %v262
    %v295 = vunpack.c.l.b16 %v263
    %v296 = vunpack.c.l.b16 %v264
    %v297 = vunpack.c.l.b16 %v265
    %v298 = vunpack.c.l.b16 %v266
    %v299 = vunpack.c.l.b16 %v267
    %v300 = vunpack.c.l.b16 %v268
    %v301 = vunpack.c.l.b16 %v269
    %v302 = vpack.c.b16 %v287, %v286
    %v303 = vpack.c.b16 %v289, %v288
    %v304 = vpack.c.b16 %v291, %v290
    %v305 = vpack.c.b16 %v293, %v292
    %v306 = vpack.c.b16 %v295, %v294
    %v307 = vpack.c.b16 %v297, %v296
    %v308 = vpack.c.b16 %v299, %v298
    %v309 = vpack.c.b16 %v301, %v300
    %318 = vmatprep.subr.bf16.mxu0 0
    %319 = vmatpush1.bf16.msra.mxu0 %v302
    %320 = vmatprep.subr.bf16.mxu0 0
    %321 = vmatpush1.bf16.msra.mxu0 %v303
    %322 = vmatprep.subr.bf16.mxu0 0
    %323 = vmatpush1.bf16.msra.mxu0 %v304
    %324 = vmatprep.subr.bf16.mxu0 0
    %325 = vmatpush1.bf16.msra.mxu0 %v305
    %326 = vmatprep.subr.bf16.mxu0 0
    %327 = vmatpush1.bf16.msra.mxu0 %v306
    %328 = vmatprep.subr.bf16.mxu0 0
    %329 = vmatpush1.bf16.msra.mxu0 %v307
    %330 = vmatprep.subr.bf16.mxu0 0
    %331 = vmatpush1.bf16.msra.mxu0 %v308
    %332 = vmatprep.subr.bf16.mxu0 0
    %333 = vmatpush1.bf16.msra.mxu0 %v309
    %334 = vmatprep.subr.bf16.mxu0 0
    %335 = vmatpush1.bf16.msra.mxu0 0
    %336 = vmatprep.subr.bf16.mxu0 0
    %337 = vmatpush1.bf16.msra.mxu0 0
    %338 = vmatprep.subr.bf16.mxu0 0
    %339 = vmatpush1.bf16.msra.mxu0 0
    %340 = vmatprep.subr.bf16.mxu0 0
    %341 = vmatpush1.bf16.msra.mxu0 0
    %342 = vmatprep.subr.bf16.mxu0 0
    %343 = vmatpush1.bf16.msra.mxu0 0
    %344 = vmatprep.subr.bf16.mxu0 0
    %345 = vmatpush1.bf16.msra.mxu0 0
    %346 = vmatprep.subr.bf16.mxu0 0
    %347 = vmatpush1.bf16.msra.mxu0 0
    %348 = vmatprep.subr.bf16.mxu0 0
    %349 = vmatpush1.bf16.msra.mxu0 0
    %350 = vmatprep.mubr.bf16.mxu0 0
    %351 = vmatmul.mubr.bf16.gmra.mrb[0].mxu0 %v253
    %v352 = vpop.f32.mrb[0].mxu0
    %v353 = vadd.f32 0.0, %v352
    %v354 = vpop.f32.mrb[0].mxu0
    %v355 = vpop.f32.mrb[0].mxu0
    %v356 = vpop.f32.mrb[0].mxu0
    %357 = vdwg.mxu0
    %v358 = vpack.c.bf16 %v353, %v353
    %v360 = vpack.i.b16 %v78, %v78
    %v362 = vlaneseq
    %v363 = vshrl.u32 %v362, 7
    %v364 = vsub.s32 0, %v363
    %v365 = vrot.slane %v360, %v364
    %v366 = vadd.bf16 %v358, %v365
    %367 = vst [vmem:[#allocation10] sm:$0xf] %v366
    // Predicated region
    $region38: #{tpu_custom_call.1} parent=1 // pred_check
      _
    $region39: #{tpu_custom_call.1} parent=1 // pred_check_branch
      %369 = sbr.rel (0) target = $region41
    $region40: #{tpu_custom_call.1} parent=1 // pred_region
      %s371 = ssub.s32 64, 64
      %372 = vsyncadd [#allocation4], %s371
      %s374 = sshll.u32 [#allocation10], 4
      %s375 = int_to_ptr.vmem [resolvable:$true] %s374
      %377 = dma.vmem_to_hbm [thread:$0]  %s375, 64, %s5, [#allocation4]
    $region41: #{tpu_custom_call.1} parent=1 // pred_fallthru
      _
    // Predicated region
    $region42: #{tpu_custom_call.1} parent=1 // pred_check
      _
    $region43: #{tpu_custom_call.1} parent=1 // pred_check_branch
      %379 = sbr.rel (0) target = $region45
    $region44: #{tpu_custom_call.1} parent=1 // pred_region
      %380 = dma.done [#allocation4], 64
    $region45: #{tpu_custom_call.1} parent=1 // pred_fallthru
      _
    %381 = vsyncpa [#allocation3], 1
    %382 = vsyncpa [#allocation6], 1
    %383 = vsyncpa [#allocation9], 1
    %384 = vsyncpa [#allocation4], 1

</llo_original>
